<compile_context>
chip_gen: v5e
topology: v5e:2x2
jax: 0.10.0
libtpu: 0.0.40
codegen_flags: <defaults>
</compile_context>

<pallas_src>
import math

import jax
import jax.numpy as jnp
from jax.experimental import pallas as pl
from jax.experimental.pallas import tpu as pltpu


_VMEM_LIMIT_BYTES = 48 * 1024 * 1024   # scoped VMEM limit (safe on v5e/v6e/v7x)
_VMEM_TILE_BUDGET = 40 * 1024 * 1024   # budget for double-buffered tiles


# --------------------------------------------------------------------------
# Kernels
# --------------------------------------------------------------------------
def _bst_kernel(half_ref, x_ref, w_ref, b_ref, o_ref):
    # half_ref: SMEM scalar-prefetch table (consumed only by the index_maps).
    # x_ref: (TM, H) activation row tile.
    # w_ref: (H, H) weight in PyTorch (out, in) layout, selected per half.
    # b_ref: (1, H) bias, selected per half.
    del half_ref
    # y = x @ W^T  (contract x dim 1 with W dim 1) -> MXU, f32 accumulation.
    y = jax.lax.dot_general(
        x_ref[...], w_ref[...],
        dimension_numbers=(((1,), (1,)), ((), ())),
        preferred_element_type=jnp.float32,
    )
    # Bias + ReLU in f32 (v5e-safe: no bf16 VALU), cast only on the final store.
    o_ref[...] = jnp.maximum(y + b_ref[...], 0.0).astype(o_ref.dtype)


def _half_kernel(x_ref, w_ref, b_ref, o_ref):
    # Fallback per-half kernel, same math as above.
    y = jax.lax.dot_general(
        x_ref[...], w_ref[...],
        dimension_numbers=(((1,), (1,)), ((), ())),
        preferred_element_type=jnp.float32,
    )
    o_ref[...] = jnp.maximum(y + b_ref[...], 0.0).astype(o_ref.dtype)


# --------------------------------------------------------------------------
# Tiling helpers
# --------------------------------------------------------------------------
def _row_tile_cap(hidden, itemsize=4, budget=_VMEM_TILE_BUDGET):
    """Largest row-tile (multiple of 8) whose double-buffered tiles fit VMEM."""
    # Fixed per-step cost: (H,H) weight + (1,H) bias, each double-buffered.
    fixed = 2 * itemsize * (hidden * hidden + 8 * max(hidden, 128))
    remain = budget - fixed
    if remain <= 0:
        # TODO(synk): K/N-tile the (H,H) weight block (with an f32 scratch
        # accumulator) for very large hidden sizes that don't fit VMEM.
        return 8
    # x tile + out tile, each double-buffered -> 4 * tm * H * itemsize bytes.
    cap = remain // (4 * hidden * itemsize)
    return int(max(8, min(2048, (cap // 8) * 8)))


def _pick_row_tile(g, cap):
    """Largest multiple of 8 <= cap that divides g (0 if none exists)."""
    limit = min(g, cap)
    tm = (limit // 8) * 8
    while tm >= 8:
        if g % tm == 0:
            return tm
        tm -= 8
    return 0


# --------------------------------------------------------------------------
# pallas_call wrappers
# --------------------------------------------------------------------------
def _fused_forward(x2d, w_stack, b_stack3, fwd_rows, tm):
    """One fused, row-tiled pallas_call covering both encoder halves."""
    R, H = x2d.shape
    num_tiles = R // tm
    fwd_tiles = fwd_rows // tm
    # Per-tile encoder selector: 0 = forward half, 1 = backward half.
    half_id = (jnp.arange(num_tiles, dtype=jnp.int32) >= fwd_tiles).astype(jnp.int32)

    flops = 2 * R * H * H
    bytes_accessed = 4 * (2 * R * H + int(w_stack.size) + int(b_stack3.size))

    return pl.pallas_call(
        _bst_kernel,
        out_shape=jax.ShapeDtypeStruct((R, H), x2d.dtype),
        grid_spec=pltpu.PrefetchScalarGridSpec(
            num_scalar_prefetch=1,
            grid=(num_tiles,),
            in_specs=[
                pl.BlockSpec((tm, H), lambda i, half: (i, 0)),
                # Weight/bias block index comes from the prefetch table; it only
                # changes once (at the half boundary), so the runtime re-DMAs
                # the (H, H) block exactly once.
                pl.BlockSpec((None, H, H), lambda i, half: (half[i], 0, 0)),
                pl.BlockSpec((None, 1, H), lambda i, half: (half[i], 0, 0)),
            ],
            out_specs=pl.BlockSpec((tm, H), lambda i, half: (i, 0)),
        ),
        compiler_params=pltpu.CompilerParams(
            # Row tiles are independent -> shard across v7x's 2 TensorCores.
            dimension_semantics=("parallel",),
            vmem_limit_bytes=_VMEM_LIMIT_BYTES,
        ),
        cost_estimate=pl.CostEstimate(
            flops=flops, transcendentals=0, bytes_accessed=bytes_accessed),
    )(half_id, x2d, w_stack, b_stack3)


def _half_forward(x2d, w, b, cap):
    """Fallback: row-tiled call for one encoder half (rows padded to mult. of 8)."""
    R, H = x2d.shape
    if R == 0:
        return jnp.zeros((0, H), x2d.dtype)
    r_pad = ((R + 7) // 8) * 8
    xp = x2d if r_pad == R else jnp.pad(x2d, ((0, r_pad - R), (0, 0)))
    tm = _pick_row_tile(r_pad, cap)  # r_pad is a multiple of 8 -> tm >= 8

    out = pl.pallas_call(
        _half_kernel,
        out_shape=jax.ShapeDtypeStruct((r_pad, H), x2d.dtype),
        grid=(r_pad // tm,),
        in_specs=[
            pl.BlockSpec((tm, H), lambda i: (i, 0)),
            pl.BlockSpec((H, H), lambda i: (0, 0)),
            pl.BlockSpec((1, H), lambda i: (0, 0)),
        ],
        out_specs=pl.BlockSpec((tm, H), lambda i: (i, 0)),
        compiler_params=pltpu.CompilerParams(
            dimension_semantics=("parallel",),
            vmem_limit_bytes=_VMEM_LIMIT_BYTES,
        ),
        cost_estimate=pl.CostEstimate(
            flops=2 * r_pad * H * H, transcendentals=0,
            bytes_accessed=4 * (2 * r_pad * H + H * H + H)),
    )(xp, w, b.reshape(1, H))
    return out[:R] if r_pad != R else out


# --------------------------------------------------------------------------
# Params + top-level forward
# --------------------------------------------------------------------------
def init_bst_params(hidden_dim, key):
    """Deterministic init mimicking two nn.Linear(hidden, hidden) layers.

    Weights kept in PyTorch (out_features, in_features) layout and stacked as
    (2, H, H) so the fused kernel selects forward/backward per row tile; no
    transpose is ever materialized at call time.
    """
    k1, k2, k3, k4 = jax.random.split(key, 4)
    scale = 1.0 / math.sqrt(hidden_dim)
    w_f = jax.random.uniform(k1, (hidden_dim, hidden_dim), jnp.float32, -scale, scale)
    b_f = jax.random.uniform(k2, (hidden_dim,), jnp.float32, -scale, scale)
    w_b = jax.random.uniform(k3, (hidden_dim, hidden_dim), jnp.float32, -scale, scale)
    b_b = jax.random.uniform(k4, (hidden_dim,), jnp.float32, -scale, scale)
    return {"w": jnp.stack([w_f, w_b]), "b": jnp.stack([b_f, b_b])}


@jax.jit
def belief_state_transformer(embeddings, params):
    """Forward pass of BeliefStateTransformer.

    embeddings: (seq_len, batch, hidden) float32
    returns:    (seq_len, batch, hidden) float32
    """
    seq_len, batch, hidden = embeddings.shape
    midpoint = seq_len // 2
    fwd_rows = midpoint * batch
    bwd_rows = (seq_len - midpoint) * batch
    R = seq_len * batch

    # The flip(0)/flip(0) pair around the backward encoder cancels exactly for
    # a row-wise Linear+ReLU, so both flips are removed (identical numerics).
    x2d = embeddings.reshape(R, hidden)

    cap = _row_tile_cap(hidden, jnp.dtype(x2d.dtype).itemsize)
    g = math.gcd(fwd_rows, bwd_rows) if (fwd_rows and bwd_rows) else max(fwd_rows, bwd_rows)
    tm = _pick_row_tile(g, cap) if g > 0 else 0

    if tm > 0 and fwd_rows > 0:
        out2d = _fused_forward(
            x2d, params["w"], params["b"][:, None, :], fwd_rows, tm)
    else:
        # No common multiple-of-8 tile divides both halves: run each half as
        # its own row-tiled call (rows padded to a multiple of 8) and concat.
        fe = _half_forward(x2d[:fwd_rows], params["w"][0], params["b"][0], cap)
        be = _half_forward(x2d[fwd_rows:], params["w"][1], params["b"][1], cap)
        out2d = jnp.concatenate([fe, be], axis=0)

    return out2d.reshape(seq_len, batch, hidden)


def _reference(embeddings, params):
    """Pure-JAX reference mirroring the PyTorch module (flips included)."""
    seq_len = embeddings.shape[0]
    midpoint = seq_len // 2
    fe_in = embeddings[:midpoint]
    be_in = embeddings[midpoint:][::-1]
    fe_out = jax.nn.relu(fe_in @ params["w"][0].T + params["b"][0])
    be_out = jax.nn.relu(be_in @ params["w"][1].T + params["b"][1])[::-1]
    return jnp.concatenate([fe_out, be_out], axis=0)


if __name__ == "__main__":
    key = jax.random.PRNGKey(0)
    k_emb, k_params = jax.random.split(key)

    seq_len, batch, hidden = 8, 2, 32
    embeddings = jax.random.normal(k_emb, (seq_len, batch, hidden), jnp.float32)
    params = init_bst_params(hidden, k_params)

    out = jax.block_until_ready(belief_state_transformer(embeddings, params))
    ref = _reference(embeddings, params)
    assert out.shape == (seq_len, batch, hidden)
    assert jnp.allclose(out, ref, atol=1e-5, rtol=1e-5), "mismatch vs reference"

    # Exercise the odd-seq_len fallback path (no common tile divides halves).
    emb_odd = jax.random.normal(k_emb, (9, 2, hidden), jnp.float32)
    out_odd = jax.block_until_ready(belief_state_transformer(emb_odd, params))
    ref_odd = _reference(emb_odd, params)
    assert jnp.allclose(out_odd, ref_odd, atol=1e-5, rtol=1e-5), "mismatch (odd seq)"

    print("KERNEL_OK")
</pallas_src>

<mosaic_0001>
module attributes {stable_mosaic.version = 11 : i64} {
  func.func @_bst_kernel(%arg0: i32, %arg1: memref<2xi32, #tpu.memory_space<smem>>, %arg2: memref<8x32xf32, #tpu.memory_space<vmem>>, %arg3: memref<1x32x32xf32, #tpu.memory_space<vmem>>, %arg4: memref<1x1x32xf32, #tpu.memory_space<vmem>>, %arg5: memref<8x32xf32, #tpu.memory_space<vmem>>) attributes {dimension_semantics = [#tpu.dimension_semantics<parallel>], iteration_bounds = array<i64: 2>, scalar_prefetch = 1 : i64, scratch_operands = 0 : i64, tpu.core_type = #tpu.core_type<tc>, window_params = [{transform_indices = @transform_0, window_bounds = array<i64: 8, 32>}, {transform_indices = @transform_1, window_bounds = array<i64: 1, 32, 32>}, {transform_indices = @transform_2, window_bounds = array<i64: 1, 1, 32>}, {transform_indices = @transform_3, window_bounds = array<i64: 8, 32>}]} {
    %c0 = arith.constant 0 : index
    %c0_0 = arith.constant 0 : index
    %0 = vector.load %arg2[%c0, %c0_0] : memref<8x32xf32, #tpu.memory_space<vmem>>, vector<8x32xf32>
    %c0_1 = arith.constant 0 : index
    %c0_2 = arith.constant 0 : index
    %c0_3 = arith.constant 0 : index
    %1 = vector.load %arg3[%c0_1, %c0_2, %c0_3] : memref<1x32x32xf32, #tpu.memory_space<vmem>>, vector<1x32x32xf32>
    %2 = vector.shape_cast %1 : vector<1x32x32xf32> to vector<32x32xf32>
    %cst = arith.constant dense<0.000000e+00> : vector<8x32xf32>
    %3 = tpu.matmul %0, %2, %cst {dimension_numbers = #tpu.dot_dimension_numbers<[1], [1], [0], [0], [0, 0, 1, 0], [], []>} : vector<8x32xf32>, vector<32x32xf32>, vector<8x32xf32> -> vector<8x32xf32>
    %c0_4 = arith.constant 0 : index
    %c0_5 = arith.constant 0 : index
    %c0_6 = arith.constant 0 : index
    %4 = vector.load %arg4[%c0_4, %c0_5, %c0_6] : memref<1x1x32xf32, #tpu.memory_space<vmem>>, vector<1x1x32xf32>
    %5 = vector.shape_cast %4 : vector<1x1x32xf32> to vector<1x32xf32>
    %6 = vector.broadcast %5 : vector<1x32xf32> to vector<8x32xf32>
    %7 = arith.addf %3, %6 : vector<8x32xf32>
    %cst_7 = arith.constant 0.000000e+00 : f32
    %8 = vector.broadcast %cst_7 : f32 to vector<8x32xf32>
    %9 = arith.maximumf %7, %8 : vector<8x32xf32>
    %c0_8 = arith.constant 0 : index
    %c0_9 = arith.constant 0 : index
    %10 = vector.load %arg5[%c0_8, %c0_9] : memref<8x32xf32, #tpu.memory_space<vmem>>, vector<8x32xf32>
    tpu.vector_store %arg5[%c0_8, %c0_9], %9 {strides = array<i32>} : memref<8x32xf32, #tpu.memory_space<vmem>>, vector<8x32xf32>,
    return
  }
  func.func @transform_0(%arg0: i32, %arg1: memref<2xi32, #tpu.memory_space<smem>>) -> (i32, i32) {
    %c0_i32 = arith.constant 0 : i32
    %c0_i32_0 = arith.constant 0 : i32
    return %arg0, %c0_i32 : i32, i32
  }
  func.func @transform_1(%arg0: i32, %arg1: memref<2xi32, #tpu.memory_space<smem>>) -> (i32, i32, i32) {
    %0 = arith.index_cast %arg0 : i32 to index
    %1 = memref.load %arg1[%0] : memref<2xi32, #tpu.memory_space<smem>>
    %c0_i32 = arith.constant 0 : i32
    %c0_i32_0 = arith.constant 0 : i32
    %c0_i32_1 = arith.constant 0 : i32
    return %1, %c0_i32, %c0_i32_0 : i32, i32, i32
  }
  func.func @transform_2(%arg0: i32, %arg1: memref<2xi32, #tpu.memory_space<smem>>) -> (i32, i32, i32) {
    %0 = arith.index_cast %arg0 : i32 to index
    %1 = memref.load %arg1[%0] : memref<2xi32, #tpu.memory_space<smem>>
    %c0_i32 = arith.constant 0 : i32
    %c0_i32_0 = arith.constant 0 : i32
    %c0_i32_1 = arith.constant 0 : i32
    return %1, %c0_i32, %c0_i32_0 : i32, i32, i32
  }
  func.func @transform_3(%arg0: i32, %arg1: memref<2xi32, #tpu.memory_space<smem>>) -> (i32, i32) {
    %c0_i32 = arith.constant 0 : i32
    %c0_i32_0 = arith.constant 0 : i32
    return %arg0, %c0_i32 : i32, i32
  }
}

</mosaic_0001>

<llo_original>
// kernel: belief_state_transformer.1
$region0: #{belief_state_transformer.1}
  #allocation0 [shape = 'u32[]', space=smem, size = 0x4, offset = 0x4, fixed_abs, tag = 'smem constant byte address 0x4 - core index']
  #allocation1 [shape = 'u32[72,128]{1,0:T(1,128)}', space=vmem, size = 0x9000, scoped, tag = 'internal scratch']
  #allocation2 [shape = 's32[1]{0}', space=sflag, size = 0x4, scoped, tag = 'scoped memory for belief_state_transformer.1']
  #allocation3 [shape = 'u8[512]{0}', space=smem, size = 0x200, scoped, tag = 'prefetched SMEM operand 0']
  %s0 = inlined_call_operand.vmem [shape: s32[2], index: 0, kind: input, shape index: {}]
  %s1 = inlined_call_operand.hbm [shape: f32[16,32], index: 1, kind: input, shape index: {}]
  %s2 = inlined_call_operand.hbm [shape: f32[2,32,32], index: 2, kind: input, shape index: {}]
  %s3 = inlined_call_operand.vmem [shape: f32[2,1,32], index: 3, kind: input, shape index: {}]
  %s4 = inlined_call_operand.hbm [shape: f32[16,32], index: 4, kind: output, shape index: {}]
  %s5 = sld [smem:[#allocation0]]
  $region53: #{belief_state_transformer.1} parent=0
    _
  %s7 = ssub.s32 1, %s5
  %s8 = scalar_select 0, %s7, %s5
  %s10 = sshll.u32 %s0, 4
  %s11 = int_to_ptr.vmem [resolvable:$true] %s10
  %13 = dma.vmem_to_smem %s11, 16, [#allocation3], [#allocation2]
  %15 = dma.done [#allocation2], 16
  %16 = sfence
  $region1: #{belief_state_transformer.1} parent=0
    #allocation4 [shape = 'u8[8192]{0}', space=vmem, size = 0x2000, scoped, tag = 'input window, operand 1']
    #allocation5 [shape = 's32[2]{0}', space=sflag, size = 0x8, scoped, tag = 'scoped memory for belief_state_transformer.1']
    #allocation6 [shape = 's32[2]{0}', space=sflag, size = 0x8, scoped, tag = 'scoped memory for belief_state_transformer.1']
    #allocation7 [shape = 'u8[32768]{0}', space=vmem, size = 0x8000, scoped, tag = 'input window, operand 2']
    #allocation8 [shape = 's32[2]{0}', space=sflag, size = 0x8, scoped, tag = 'scoped memory for belief_state_transformer.1']
    #allocation9 [shape = 'u8[8192]{0}', space=vmem, size = 0x2000, scoped, tag = 'output window, operand 0']
    %17 = vsyncpa [#allocation5], 0
    %s18 = scalar_lea.sflag [#allocation5], 1
    %19 = vsyncpa %s18, 0
    %20 = vsyncpa [#allocation8], 0
    %s21 = scalar_lea.sflag [#allocation8], 1
    %22 = vsyncpa %s21, 0
    %23 = vsyncpa [#allocation6], 0
    %s24 = scalar_lea.sflag [#allocation6], 1
    %25 = vsyncpa %s24, 0
    loop: start=0, step=1, limit=4
    $region2: #{belief_state_transformer.1} parent=1 // loop_pre_header
      _
    $region3: #{belief_state_transformer.1} parent=1 // loop_header
      %s27 = sphi 0, %s31
      %p28 = scmp.ge.s32.totalorder %s27, 4
      %s37 = sphi 0, %s39
      %s40 = sphi 0, %s37
      %s41 = sphi 0, %s40
      %s57 = sphi 0, %s41
      %s65 = sphi 0, %s67
      %s68 = sphi 0, %s65
      %s69 = sphi 0, %s68
      %s85 = sphi 0, %s69
      %s93 = sphi 0, %s95
      %s96 = sphi 0, %s93
      %s97 = sphi 0, %s96
      %s113 = sphi 0, %s97
      %s119 = sphi 0, %s121
      %s122 = sphi 0, %s119
      %s123 = sphi 0, %s122
      %s139 = sphi 0, %s123
    $region4: #{belief_state_transformer.1} parent=1 // loop_header_branch
      %30 = sbr.rel (%p28) target = $region8
    $region5: #{belief_state_transformer.1} parent=1 // loop_body
      %s32 = ssub.s32 %s27, 1
      %s33 = ssub.s32 %s27, 2
      %s34 = sadd.s32 %s27, 1
      %s35 = ssub.s32 %s27, %s34
      %p36 = scmp.eq.s32.totalorder %s35, 0
      %s38 = sadd.s32 %s37, 1
      %s39 = scalar_select %p36, %s37, %s38
      %p42 = pneg %p36
      %p43 = scmp.eq.s32.totalorder %s27, 1
      %p44 = por %p42, %p43
      %p45 = scmp.ne.s32.totalorder %s37, %s40
      %p46 = scmp.eq.s32.totalorder %s27, 0
      %p47 = por %p45, %p46
      %p48 = scmp.ne.s32.totalorder %s37, %s40
      %p49 = scmp.eq.s32.totalorder %s32, 1
      %p50 = por %p48, %p49
      %p51 = scmp.ne.s32.totalorder %s40, %s41
      %p52 = scmp.eq.s32.totalorder %s32, 0
      %p53 = por %p51, %p52
      %p54 = scmp.ne.s32.totalorder %s40, %s41
      %p55 = scmp.eq.s32.totalorder %s33, 1
      %p56 = por %p54, %p55
      %p58 = scmp.ne.s32.totalorder %s41, %s57
      %p59 = scmp.eq.s32.totalorder %s33, 0
      %p60 = por %p58, %p59
      %s61 = sld [smem:[#allocation3 + %s27]]
      %s62 = sld [smem:[#allocation3 + %s34]]
      %s63 = ssub.s32 %s61, %s62
      %p64 = scmp.eq.s32.totalorder %s63, 0
      %s66 = sadd.s32 %s65, 1
      %s67 = scalar_select %p64, %s65, %s66
      %p70 = pneg %p64
      %p71 = scmp.eq.s32.totalorder %s27, 1
      %p72 = por %p70, %p71
      %p73 = scmp.ne.s32.totalorder %s65, %s68
      %p74 = scmp.eq.s32.totalorder %s27, 0
      %p75 = por %p73, %p74
      %p76 = scmp.ne.s32.totalorder %s65, %s68
      %p77 = scmp.eq.s32.totalorder %s32, 1
      %p78 = por %p76, %p77
      %p79 = scmp.ne.s32.totalorder %s68, %s69
      %p80 = scmp.eq.s32.totalorder %s32, 0
      %p81 = por %p79, %p80
      %p82 = scmp.ne.s32.totalorder %s68, %s69
      %p83 = scmp.eq.s32.totalorder %s33, 1
      %p84 = por %p82, %p83
      %p86 = scmp.ne.s32.totalorder %s69, %s85
      %p87 = scmp.eq.s32.totalorder %s33, 0
      %p88 = por %p86, %p87
      %s89 = sld [smem:[#allocation3 + %s27]]
      %s90 = sld [smem:[#allocation3 + %s34]]
      %s91 = ssub.s32 %s89, %s90
      %p92 = scmp.eq.s32.totalorder %s91, 0
      %s94 = sadd.s32 %s93, 1
      %s95 = scalar_select %p92, %s93, %s94
      %p98 = pneg %p92
      %p99 = scmp.eq.s32.totalorder %s27, 1
      %p100 = por %p98, %p99
      %p101 = scmp.ne.s32.totalorder %s93, %s96
      %p102 = scmp.eq.s32.totalorder %s27, 0
      %p103 = por %p101, %p102
      %p104 = scmp.ne.s32.totalorder %s93, %s96
      %p105 = scmp.eq.s32.totalorder %s32, 1
      %p106 = por %p104, %p105
      %p107 = scmp.ne.s32.totalorder %s96, %s97
      %p108 = scmp.eq.s32.totalorder %s32, 0
      %p109 = por %p107, %p108
      %p110 = scmp.ne.s32.totalorder %s96, %s97
      %p111 = scmp.eq.s32.totalorder %s33, 1
      %p112 = por %p110, %p111
      %p114 = scmp.ne.s32.totalorder %s97, %s113
      %p115 = scmp.eq.s32.totalorder %s33, 0
      %p116 = por %p114, %p115
      %s117 = ssub.s32 %s27, %s34
      %p118 = scmp.eq.s32.totalorder %s117, 0
      %s120 = sadd.s32 %s119, 1
      %s121 = scalar_select %p118, %s119, %s120
      %p124 = pneg %p118
      %p125 = scmp.eq.s32.totalorder %s27, 1
      %p126 = por %p124, %p125
      %p127 = scmp.ne.s32.totalorder %s119, %s122
      %p128 = scmp.eq.s32.totalorder %s27, 0
      %p129 = por %p127, %p128
      %p130 = scmp.ne.s32.totalorder %s119, %s122
      %p131 = scmp.eq.s32.totalorder %s32, 1
      %p132 = por %p130, %p131
      %p133 = scmp.ne.s32.totalorder %s122, %s123
      %p134 = scmp.eq.s32.totalorder %s32, 0
      %p135 = por %p133, %p134
      %p136 = scmp.ne.s32.totalorder %s122, %s123
      %p137 = scmp.eq.s32.totalorder %s33, 1
      %p138 = por %p136, %p137
      %p140 = scmp.ne.s32.totalorder %s123, %s139
      %p141 = scmp.eq.s32.totalorder %s33, 0
      %p142 = por %p140, %p141
      %p143 = scmp.le.s32.totalorder 1, %s27
      %p144 = scmp.lt.s32.totalorder %s27, 3
      %p145 = pnand %p143, %p144
      %p146 = pneg %p145
      // Predicated region
      $region9: #{belief_state_transformer.1} parent=5 // pred_check
        _
      $region10: #{belief_state_transformer.1} parent=5 // pred_check_branch
        %148 = sbr.rel (%p145) target = $region12
      $region11: #{belief_state_transformer.1} parent=5 // pred_region
        %s149 = ssub.s32 %s27, 1
      $region12: #{belief_state_transformer.1} parent=5 // pred_fallthru
        _
      %p150 = scmp.lt.s32.totalorder %s27, 2
      // Predicated region
      $region13: #{belief_state_transformer.1} parent=5 // pred_check
        %p151 = pneg %p150
      $region14: #{belief_state_transformer.1} parent=5 // pred_check_branch
        %153 = sbr.rel (%p151) target = $region16
      $region15: #{belief_state_transformer.1} parent=5 // pred_region
        // Predicated region
        $region17: #{belief_state_transformer.1} parent=15 // pred_check
          %p154 = pneg %p47
        $region18: #{belief_state_transformer.1} parent=15 // pred_check_branch
          %156 = sbr.rel (%p154) target = $region20
        $region19: #{belief_state_transformer.1} parent=15 // pred_region
          %s157 = sand.u32 %s37, 1
          %s158 = scalar_lea.sflag [#allocation5], %s157
          %s159 = sand.u32 %s37, 1
          %s160 = smul.addr %s159, 8
          %s161 = scalar_lea.vmem [#allocation4], %s160
          %163 = vsyncadd %s158, 0
          %s164 = smul.addr %s27, 8
          %s165 = scalar_lea.hbm %s1, %s164
          %s167 = sshll.u32 %s165, 4
          %s168 = int_to_ptr.hbm [resolvable:$true] %s167
          %s169 = sshll.u32 %s161, 4
          %s170 = int_to_ptr.vmem [resolvable:$true] %s169
          %172 = dma.hbm_to_vmem [thread:$0]  %s168, 128, %s170, %s158
        $region20: #{belief_state_transformer.1} parent=15 // pred_fallthru
          _
        // Predicated region
        $region21: #{belief_state_transformer.1} parent=15 // pred_check
          %p173 = pneg %p75
        $region22: #{belief_state_transformer.1} parent=15 // pred_check_branch
          %175 = sbr.rel (%p173) target = $region24
        $region23: #{belief_state_transformer.1} parent=15 // pred_region
          %s176 = sand.u32 %s65, 1
          %s177 = scalar_lea.sflag [#allocation8], %s176
          %s178 = sand.u32 %s65, 1
          %s179 = smul.addr %s178, 32
          %s180 = scalar_lea.vmem [#allocation7], %s179
          %s181 = sld [smem:[#allocation3 + %s27]]
          %183 = vsyncadd %s177, 0
          %s184 = smul.addr %s181, 4
          %s185 = smul.addr %s184, 8
          %s186 = scalar_lea.hbm %s2, %s185
          %s187 = sshll.u32 %s186, 4
          %s188 = int_to_ptr.hbm [resolvable:$true] %s187
          %s189 = sshll.u32 %s180, 4
          %s190 = int_to_ptr.vmem [resolvable:$true] %s189
          %195 = dma.hbm_to_vmem [thread:$0]  %s188, 512, %s190, %s177, 128, 128, 8
        $region24: #{belief_state_transformer.1} parent=15 // pred_fallthru
          _
        // Predicated region
        $region25: #{belief_state_transformer.1} parent=15 // pred_check
          %p196 = pneg %p103
        $region26: #{belief_state_transformer.1} parent=15 // pred_check_branch
          %198 = sbr.rel (%p196) target = $region28
        $region27: #{belief_state_transformer.1} parent=15 // pred_region
          %s199 = sld [smem:[#allocation3 + %s27]]
          %p200 = scmp.lt.s32.totalorder %s199, 1
          %s201 = scalar_select %p200, %s199, 1
          %s202 = scalar_lea.vmem %s3, %s201
          %s203 = sld [smem:[#allocation3 + %s27]]
        $region28: #{belief_state_transformer.1} parent=15 // pred_fallthru
          _
      $region16: #{belief_state_transformer.1} parent=5 // pred_fallthru
        _
      %p204 = scmp.le.s32.totalorder 1, %s27
      %p205 = scmp.lt.s32.totalorder %s27, 3
      %p206 = pnand %p204, %p205
      %p207 = pneg %p206
      // Predicated region
      $region29: #{belief_state_transformer.1} parent=5 // pred_check
        _
      $region30: #{belief_state_transformer.1} parent=5 // pred_check_branch
        %209 = sbr.rel (%p206) target = $region32
      $region31: #{belief_state_transformer.1} parent=5 // pred_region
        %s210 = ssub.s32 %s27, 1
        %s211 = sand.u32 %s40, 1
        %s212 = scalar_lea.sflag [#allocation5], %s211
        %s213 = sand.u32 %s40, 1
        %s214 = smul.addr %s213, 8
        %s215 = scalar_lea.vmem [#allocation4], %s214
        // Predicated region
        $region33: #{belief_state_transformer.1} parent=31 // pred_check
          %p216 = pneg %p53
        $region34: #{belief_state_transformer.1} parent=31 // pred_check_branch
          %218 = sbr.rel (%p216) target = $region36
        $region35: #{belief_state_transformer.1} parent=31 // pred_region
          %220 = dma.done %s212, 128
        $region36: #{belief_state_transformer.1} parent=31 // pred_fallthru
          _
        %s221 = sand.u32 %s68, 1
        %s222 = scalar_lea.sflag [#allocation8], %s221
        %s223 = sand.u32 %s68, 1
        %s224 = smul.addr %s223, 32
        %s225 = scalar_lea.vmem [#allocation7], %s224
        // Predicated region
        $region37: #{belief_state_transformer.1} parent=31 // pred_check
          %p226 = pneg %p81
        $region38: #{belief_state_transformer.1} parent=31 // pred_check_branch
          %228 = sbr.rel (%p226) target = $region40
        $region39: #{belief_state_transformer.1} parent=31 // pred_region
          %230 = dma.done %s222, 512
        $region40: #{belief_state_transformer.1} parent=31 // pred_fallthru
          _
        %s231 = sand.u32 %s40, 1
        %s232 = scalar_lea.sflag [#allocation5], %s231
        %s233 = sand.u32 %s40, 1
        %s234 = smul.addr %s233, 8
        %s235 = scalar_lea.vmem [#allocation4], %s234
        %p236 = pneg %p53
        %p237 = pneg %p50
        %s238 = sand.u32 %s68, 1
        %s239 = scalar_lea.sflag [#allocation8], %s238
        %s240 = sand.u32 %s68, 1
        %s241 = smul.addr %s240, 32
        %s242 = scalar_lea.vmem [#allocation7], %s241
        %p243 = pneg %p81
        %p244 = pneg %p78
        %s245 = sld [smem:[#allocation3 + %s32]]
        %p246 = scmp.lt.s32.totalorder %s245, 1
        %s247 = scalar_select %p246, %s245, 1
        %s248 = scalar_lea.vmem %s3, %s247
        %p249 = pneg %p109
        %p250 = pneg %p106
        %p251 = pneg %p135
        %p252 = pneg %p132
        %s253 = sand.u32 %s122, 1
        %s254 = scalar_lea.sflag [#allocation6], %s253
        %s255 = sand.u32 %s122, 1
        %s256 = smul.addr %s255, 8
        %s257 = scalar_lea.vmem [#allocation9], %s256
        %s258 = sld [smem:[#allocation3 + %s32]]
        %s259 = sld [smem:[#allocation3 + %s32]]
        %p260 = scmp.lt.s32.totalorder %s259, 1
        %s261 = scalar_select %p260, %s259, 1
        %s262 = scalar_lea.vmem %s3, %s261
        %s263 = sld [smem:[#allocation3 + %s32]]
        %v264 = vld [vmem:[%s215] sm:$0xff]
        %v265 = vld [vmem:[%s225] sm:$0xff]
        %v266 = vld [vmem:[%s225 + $0x8] sm:$0xff]
        %v267 = vld [vmem:[%s225 + $0x10] sm:$0xff]
        %v268 = vld [vmem:[%s225 + $0x18] sm:$0xff]
        %v269 = vld [vmem:[%s262] sm:$0x1]
        %v271 = vperm.slane %v269, 0
        %vm273 = vcmask 261120
        %v275 = vsel %vm273, %v264, 0
        %v278 = vsel %vm273, %v265, 0
        %v281 = vsel %vm273, %v266, 0
        %v284 = vsel %vm273, %v267, 0
        %v287 = vsel %vm273, %v268, 0
        %289 = vmatpush.xpose.msra.mxu0 0.0
        %290 = vmatpush.xpose.msra.mxu0 0.0
        %291 = vmatpush.xpose.msra.mxu0 0.0
        %292 = vmatpush.xpose.msra.mxu0 0.0
        %293 = vmatpush.xpose.msra.mxu0 0.0
        %294 = vmatpush.xpose.msra.mxu0 0.0
        %295 = vmatpush.xpose.msra.mxu0 0.0
        %296 = vmatpush.xpose.msra.mxu0 0.0
        %297 = vmatpush.xpose.msra.mxu0 0.0
        %298 = vmatpush.xpose.msra.mxu0 0.0
        %299 = vmatpush.xpose.msra.mxu0 0.0
        %300 = vmatpush.xpose.msra.mxu0 0.0
        %301 = vmatpush.xpose.msra.mxu0 %v287
        %302 = vmatpush.xpose.msra.mxu0 %v284
        %303 = vmatpush.xpose.msra.mxu0 %v281
        %304 = vmatpush.xpose.msra.mxu0 %v278
        %305 = vmatmul.f32.gmra.mxu0 %v275
        %v306 = vpop.f32.mrf.mxu0
        %v307 = vadd.f32 %v271, %v306
        %308 = vdwg.mxu0
        %v309 = vmax.f32 %v307, 0.0
        %310 = vst.msk [vmem:[%s257] sm:$0xff] %vm273, %v309
        %s311 = sand.u32 %s122, 1
        %s312 = scalar_lea.sflag [#allocation6], %s311
        %s313 = sand.u32 %s122, 1
        %s314 = smul.addr %s313, 8
        %s315 = scalar_lea.vmem [#allocation9], %s314
        // Predicated region
        $region41: #{belief_state_transformer.1} parent=31 // pred_check
          %p316 = pneg %p132
        $region42: #{belief_state_transformer.1} parent=31 // pred_check_branch
          %318 = sbr.rel (%p316) target = $region44
        $region43: #{belief_state_transformer.1} parent=31 // pred_region
          %320 = vsyncadd %s312, 0
          %s321 = smul.addr %s32, 8
          %s322 = scalar_lea.hbm %s4, %s321
          %s324 = sshll.u32 %s315, 4
          %s325 = int_to_ptr.vmem [resolvable:$true] %s324
          %s326 = sshll.u32 %s322, 4
          %s327 = int_to_ptr.hbm [resolvable:$true] %s326
          %329 = dma.vmem_to_hbm [thread:$0]  %s325, 128, %s327, %s312
        $region44: #{belief_state_transformer.1} parent=31 // pred_fallthru
          _
      $region32: #{belief_state_transformer.1} parent=5 // pred_fallthru
        _
      %p330 = scmp.le.s32.totalorder 2, %s27
      // Predicated region
      $region45: #{belief_state_transformer.1} parent=5 // pred_check
        %p331 = pneg %p330
      $region46: #{belief_state_transformer.1} parent=5 // pred_check_branch
        %333 = sbr.rel (%p331) target = $region48
      $region47: #{belief_state_transformer.1} parent=5 // pred_region
        %s334 = ssub.s32 %s27, 2
        // Predicated region
        $region49: #{belief_state_transformer.1} parent=47 // pred_check
          %p335 = pneg %p138
        $region50: #{belief_state_transformer.1} parent=47 // pred_check_branch
          %337 = sbr.rel (%p335) target = $region52
        $region51: #{belief_state_transformer.1} parent=47 // pred_region
          %s338 = sand.u32 %s123, 1
          %s339 = scalar_lea.sflag [#allocation6], %s338
          %s340 = sand.u32 %s123, 1
          %s341 = smul.addr %s340, 8
          %s342 = scalar_lea.vmem [#allocation9], %s341
          %344 = dma.done %s339, 128
        $region52: #{belief_state_transformer.1} parent=47 // pred_fallthru
          _
      $region48: #{belief_state_transformer.1} parent=5 // pred_fallthru
        _
    $region6: #{belief_state_transformer.1} parent=1 // loop_footer
      %s31 = sadd.s32 1, %s27
    $region7: #{belief_state_transformer.1} parent=1 // loop_footer_branch
      %26 = sbr.rel target = $region3
    $region8: #{belief_state_transformer.1} parent=1 // loop_exit
      _
    %345 = vsyncpa [#allocation5], 1
    %s346 = scalar_lea.sflag [#allocation5], 1
    %347 = vsyncpa %s346, 1
    %348 = vsyncpa [#allocation8], 1
    %s349 = scalar_lea.sflag [#allocation8], 1
    %350 = vsyncpa %s349, 1
    %351 = vsyncpa [#allocation6], 1
    %s352 = scalar_lea.sflag [#allocation6], 1
    %353 = vsyncpa %s352, 1

</llo_original>
